<compile_context>
chip_gen: v5e
topology: v5e:2x2
jax: 0.10.0
libtpu: 0.0.40
codegen_flags: <defaults>
</compile_context>

<pallas_src>
import jax
import jax.numpy as jnp
from jax.experimental import pallas as pl
from jax.experimental.pallas import tpu as pltpu

LANE = 128      # vreg lane width
SUBLANE = 8     # f32 sublane count


def _round_up(x: int, m: int) -> int:
    return ((x + m - 1) // m) * m


# ---------------------------------------------------------------------------
# Fused MLP kernel
# ---------------------------------------------------------------------------
def _make_mlp_kernel(num_layers: int, reduce_last: bool):
    """Build a fused kernel for `num_layers` Linear layers with ReLU between."""

    def kernel(*refs):
        x_ref, o_ref = refs[0], refs[-1]
        p_refs = refs[1:-1]                       # [w1, b1, w2, b2, ..., wL, bL]

        h = x_ref[...].astype(jnp.float32)
        for i in range(num_layers - 1):           # hidden layers: MXU matmul + ReLU
            w = p_refs[2 * i][...]
            b = p_refs[2 * i + 1][...]            # (1, H_pad) broadcasts over rows
            h = jnp.dot(h, w, preferred_element_type=jnp.float32) + b
            h = jnp.maximum(h, 0.0)

        w_last = p_refs[-2]
        b_last = p_refs[-1]
        if reduce_last:
            # out_features == 1: cheaper as a VPU/XLU reduction than an N=1 MXU
            # matmul; bias comes from SMEM as a scalar.
            y = jnp.sum(h * w_last[...], axis=-1, keepdims=True) + b_last[0]
        else:
            y = jnp.dot(h, w_last[...], preferred_element_type=jnp.float32)
            y = y + b_last[...]
        o_ref[...] = y.astype(o_ref.dtype)

    return kernel


# ---------------------------------------------------------------------------
# Parameter packing (pad hidden dims to lane-dense 128 multiples)
# ---------------------------------------------------------------------------
def prepare_params(params, output_size):
    """Zero-pad hidden widths to multiples of 128 and pack in kernel layout.

    Zero padding is exact: padded hidden columns get bias 0 -> ReLU(0)=0, and the
    corresponding padded weight rows of the next layer are 0, so nothing leaks
    into the final reduction.
    """
    n = len(params)
    reduce_last = output_size == 1
    packed = []
    prev = params[0][0].shape[0]                  # input feature count (unpadded)
    for i, (w, b) in enumerate(params):
        fin, fout = w.shape
        is_last = i == n - 1
        fout_pad = fout if is_last else _round_up(fout, LANE)
        w_p = jnp.zeros((prev, fout_pad), jnp.float32).at[:fin, :fout].set(w)
        if is_last and reduce_last:
            packed.append(w_p.T)                              # (1, H_pad) row vector
            packed.append(b.reshape(1).astype(jnp.float32))   # SMEM scalar bias
        else:
            b_p = jnp.zeros((1, fout_pad), jnp.float32).at[0, :fout].set(b)
            packed.append(w_p)
            packed.append(b_p)
        prev = fout_pad
    return tuple(packed)


# ---------------------------------------------------------------------------
# Forward pass: one pallas_call for the whole network
# ---------------------------------------------------------------------------
def basic_net_critic_forward(x, packed_params, output_size, *, tile_b=None):
    batch, in_features = x.shape
    num_layers = len(packed_params) // 2
    reduce_last = output_size == 1

    # Batch tiling: small batches run as one tile; large rollout batches stream
    # 512-row tiles (near HBM roofline) while weights stay resident in VMEM.
    if tile_b is None:
        tile_b = min(_round_up(batch, SUBLANE), 512)
    padded_batch = _round_up(batch, tile_b)
    if padded_batch != batch:
        x = jnp.pad(x, ((0, padded_batch - batch), (0, 0)))
    grid = (padded_batch // tile_b,)

    in_specs = [pl.BlockSpec((tile_b, in_features), lambda i: (i, 0))]
    for idx, arr in enumerate(packed_params):
        if reduce_last and idx == len(packed_params) - 1:
            # Final (1,) bias: SMEM scalar, no VMEM tile or DMA stream.
            in_specs.append(pl.BlockSpec(memory_space=pltpu.MemorySpace.SMEM))
        else:
            # Weights / biases: full-array VMEM blocks, block index constant
            # over the grid -> resident across all batch tiles.
            in_specs.append(pl.BlockSpec(arr.shape, lambda i: (0, 0)))

    flops = sum(2 * padded_batch * int(w.size) for w in packed_params[0::2])
    bytes_accessed = int(
        x.size * 4
        + padded_batch * output_size * 4
        + sum(int(p.size) * 4 for p in packed_params)
    )
    cost = pl.CostEstimate(flops=flops, transcendentals=0,
                           bytes_accessed=bytes_accessed)

    out = pl.pallas_call(
        _make_mlp_kernel(num_layers, reduce_last),
        out_shape=jax.ShapeDtypeStruct((padded_batch, output_size), jnp.float32),
        grid=grid,
        in_specs=in_specs,
        out_specs=pl.BlockSpec((tile_b, output_size), lambda i: (i, 0)),
        compiler_params=pltpu.CompilerParams(
            dimension_semantics=("parallel",)),
        cost_estimate=cost,
    )(x, *packed_params)
    return out[:batch]


# ---------------------------------------------------------------------------
# Params init (PyTorch nn.Linear-style uniform fan_in init) and pure-JAX ref
# ---------------------------------------------------------------------------
def init_params(key, input_size, hidden_sizes, output_size):
    sizes = [input_size] + list(hidden_sizes) + [output_size]
    params = []
    for i in range(len(sizes) - 1):
        fan_in, fan_out = sizes[i], sizes[i + 1]
        key, kw, kb = jax.random.split(key, 3)
        bound = 1.0 / jnp.sqrt(fan_in)
        w = jax.random.uniform(kw, (fan_in, fan_out), jnp.float32, -bound, bound)
        b = jax.random.uniform(kb, (fan_out,), jnp.float32, -bound, bound)
        params.append((w, b))
    return params


def reference_forward(x, params):
    h = x
    for i, (w, b) in enumerate(params):
        h = h @ w + b
        if i != len(params) - 1:
            h = jnp.maximum(h, 0.0)
    return h


if __name__ == "__main__":
    # Small shapes consistent with the module: a critic mapping obs -> scalar value.
    batch = 8
    input_size = 32
    hidden_sizes = [64, 64]
    output_size = 1

    key = jax.random.PRNGKey(0)
    key, kx = jax.random.split(key)
    x = jax.random.normal(kx, (batch, input_size), jnp.float32)
    params = init_params(key, input_size, hidden_sizes, output_size)

    packed = prepare_params(params, output_size)
    out = basic_net_critic_forward(x, packed, output_size)
    out = jax.block_until_ready(out)

    ref = reference_forward(x, params)
    assert out.shape == (batch, output_size)
    assert jnp.allclose(out, ref, atol=1e-4, rtol=1e-4)

    print("KERNEL_OK")
</pallas_src>

<mosaic_0001>
module attributes {stable_mosaic.version = 11 : i64} {
  func.func @kernel(%arg0: i32, %arg1: memref<8x32xf32, #tpu.memory_space<vmem>>, %arg2: memref<32x128xf32, #tpu.memory_space<vmem>>, %arg3: memref<1x128xf32, #tpu.memory_space<vmem>>, %arg4: memref<128x128xf32, #tpu.memory_space<vmem>>, %arg5: memref<1x128xf32, #tpu.memory_space<vmem>>, %arg6: memref<1x128xf32, #tpu.memory_space<vmem>>, %arg7: memref<1xf32, #tpu.memory_space<smem>>, %arg8: memref<8x1xf32, #tpu.memory_space<vmem>>) attributes {dimension_semantics = [#tpu.dimension_semantics<parallel>], iteration_bounds = array<i64: 1>, scalar_prefetch = 0 : i64, scratch_operands = 0 : i64, tpu.core_type = #tpu.core_type<tc>, window_params = [{transform_indices = @transform_0, window_bounds = array<i64: 8, 32>}, {pipeline_mode = #tpu.pipeline_mode<synchronous>, transform_indices = @transform_1, window_bounds = array<i64: 32, 128>}, {pipeline_mode = #tpu.pipeline_mode<synchronous>, transform_indices = @transform_2, window_bounds = array<i64: 1, 128>}, {pipeline_mode = #tpu.pipeline_mode<synchronous>, transform_indices = @transform_3, window_bounds = array<i64: 128, 128>}, {pipeline_mode = #tpu.pipeline_mode<synchronous>, transform_indices = @transform_4, window_bounds = array<i64: 1, 128>}, {pipeline_mode = #tpu.pipeline_mode<synchronous>, transform_indices = @transform_5, window_bounds = array<i64: 1, 128>}, {transform_indices = @transform_6, window_bounds = array<i64: 1>}, {transform_indices = @transform_7, window_bounds = array<i64: 8, 1>}]} {
    %c0 = arith.constant 0 : index
    %c0_0 = arith.constant 0 : index
    %0 = vector.load %arg1[%c0, %c0_0] : memref<8x32xf32, #tpu.memory_space<vmem>>, vector<8x32xf32>
    %c0_1 = arith.constant 0 : index
    %c0_2 = arith.constant 0 : index
    %1 = vector.load %arg2[%c0_1, %c0_2] : memref<32x128xf32, #tpu.memory_space<vmem>>, vector<32x128xf32>
    %c0_3 = arith.constant 0 : index
    %c0_4 = arith.constant 0 : index
    %2 = vector.load %arg3[%c0_3, %c0_4] : memref<1x128xf32, #tpu.memory_space<vmem>>, vector<1x128xf32>
    %cst = arith.constant dense<0.000000e+00> : vector<8x128xf32>
    %3 = tpu.matmul %0, %1, %cst {dimension_numbers = #tpu.dot_dimension_numbers<[1], [0], [0], [1], [0, 0, 1, 1], [], []>} : vector<8x32xf32>, vector<32x128xf32>, vector<8x128xf32> -> vector<8x128xf32>
    %4 = vector.broadcast %2 : vector<1x128xf32> to vector<8x128xf32>
    %5 = arith.addf %3, %4 : vector<8x128xf32>
    %cst_5 = arith.constant 0.000000e+00 : f32
    %6 = vector.broadcast %cst_5 : f32 to vector<8x128xf32>
    %7 = arith.maximumf %5, %6 : vector<8x128xf32>
    %c0_6 = arith.constant 0 : index
    %c0_7 = arith.constant 0 : index
    %8 = vector.load %arg4[%c0_6, %c0_7] : memref<128x128xf32, #tpu.memory_space<vmem>>, vector<128x128xf32>
    %c0_8 = arith.constant 0 : index
    %c0_9 = arith.constant 0 : index
    %9 = vector.load %arg5[%c0_8, %c0_9] : memref<1x128xf32, #tpu.memory_space<vmem>>, vector<1x128xf32>
    %cst_10 = arith.constant dense<0.000000e+00> : vector<8x128xf32>
    %10 = tpu.matmul %7, %8, %cst_10 {dimension_numbers = #tpu.dot_dimension_numbers<[1], [0], [0], [1], [0, 0, 1, 1], [], []>} : vector<8x128xf32>, vector<128x128xf32>, vector<8x128xf32> -> vector<8x128xf32>
    %11 = vector.broadcast %9 : vector<1x128xf32> to vector<8x128xf32>
    %12 = arith.addf %10, %11 : vector<8x128xf32>
    %cst_11 = arith.constant 0.000000e+00 : f32
    %13 = vector.broadcast %cst_11 : f32 to vector<8x128xf32>
    %14 = arith.maximumf %12, %13 : vector<8x128xf32>
    %c0_12 = arith.constant 0 : index
    %c0_13 = arith.constant 0 : index
    %15 = vector.load %arg6[%c0_12, %c0_13] : memref<1x128xf32, #tpu.memory_space<vmem>>, vector<1x128xf32>
    %16 = vector.broadcast %15 : vector<1x128xf32> to vector<8x128xf32>
    %17 = arith.mulf %14, %16 : vector<8x128xf32>
    %cst_14 = arith.constant dense<0.000000e+00> : vector<8xf32>
    %18 = vector.multi_reduction <add>, %17, %cst_14 [1] : vector<8x128xf32> to vector<8xf32>
    %19 = vector.shape_cast %18 : vector<8xf32> to vector<8x1xf32>
    %c0_15 = arith.constant 0 : index
    %20 = memref.load %arg7[%c0_15] : memref<1xf32, #tpu.memory_space<smem>>
    %21 = vector.broadcast %20 : f32 to vector<8x1xf32>
    %22 = arith.addf %19, %21 : vector<8x1xf32>
    %c0_16 = arith.constant 0 : index
    %c0_17 = arith.constant 0 : index
    %23 = vector.load %arg8[%c0_16, %c0_17] : memref<8x1xf32, #tpu.memory_space<vmem>>, vector<8x1xf32>
    tpu.vector_store %arg8[%c0_16, %c0_17], %22 {strides = array<i32>} : memref<8x1xf32, #tpu.memory_space<vmem>>, vector<8x1xf32>,
    return
  }
  func.func @transform_0(%arg0: i32) -> (i32, i32) {
    %c0_i32 = arith.constant 0 : i32
    %c0_i32_0 = arith.constant 0 : i32
    return %arg0, %c0_i32 : i32, i32
  }
  func.func @transform_1(%arg0: i32) -> (i32, i32) {
    %c0_i32 = arith.constant 0 : i32
    %c0_i32_0 = arith.constant 0 : i32
    %c0_i32_1 = arith.constant 0 : i32
    return %c0_i32, %c0_i32_0 : i32, i32
  }
  func.func @transform_2(%arg0: i32) -> (i32, i32) {
    %c0_i32 = arith.constant 0 : i32
    %c0_i32_0 = arith.constant 0 : i32
    %c0_i32_1 = arith.constant 0 : i32
    return %c0_i32, %c0_i32_0 : i32, i32
  }
  func.func @transform_3(%arg0: i32) -> (i32, i32) {
    %c0_i32 = arith.constant 0 : i32
    %c0_i32_0 = arith.constant 0 : i32
    %c0_i32_1 = arith.constant 0 : i32
    return %c0_i32, %c0_i32_0 : i32, i32
  }
  func.func @transform_4(%arg0: i32) -> (i32, i32) {
    %c0_i32 = arith.constant 0 : i32
    %c0_i32_0 = arith.constant 0 : i32
    %c0_i32_1 = arith.constant 0 : i32
    return %c0_i32, %c0_i32_0 : i32, i32
  }
  func.func @transform_5(%arg0: i32) -> (i32, i32) {
    %c0_i32 = arith.constant 0 : i32
    %c0_i32_0 = arith.constant 0 : i32
    %c0_i32_1 = arith.constant 0 : i32
    return %c0_i32, %c0_i32_0 : i32, i32
  }
  func.func @transform_6(%arg0: i32) -> i32 {
    %c0_i32 = arith.constant 0 : i32
    %c0_i32_0 = arith.constant 0 : i32
    return %c0_i32 : i32
  }
  func.func @transform_7(%arg0: i32) -> (i32, i32) {
    %c0_i32 = arith.constant 0 : i32
    %c0_i32_0 = arith.constant 0 : i32
    return %arg0, %c0_i32 : i32, i32
  }
}

</mosaic_0001>

<llo_original>
// kernel: tpu_custom_call.1
$region0: #{tpu_custom_call.1}
  #allocation0 [shape = 'u32[]', space=smem, size = 0x4, offset = 0x4, fixed_abs, tag = 'smem constant byte address 0x4 - core index']
  #allocation1 [shape = 'u32[72,128]{1,0:T(1,128)}', space=vmem, size = 0x9000, scoped, tag = 'internal scratch']
  #allocation2 [shape = 'f32[1]{0:T(128)S(6)}', space=smem, size = 0x200, scoped, tag = 'scoped memory for tpu_custom_call.1']
  %s0 = inlined_call_operand.hbm [shape: f32[8,32], index: 0, kind: input, shape index: {}]
  %s1 = inlined_call_operand.hbm [shape: f32[32,128], index: 1, kind: input, shape index: {}]
  %s2 = inlined_call_operand.vmem [shape: f32[1,128], index: 2, kind: input, shape index: {}]
  %s3 = inlined_call_operand.hbm [shape: f32[128,128], index: 3, kind: input, shape index: {}]
  %s4 = inlined_call_operand.vmem [shape: f32[1,128], index: 4, kind: input, shape index: {}]
  %s5 = inlined_call_operand.vmem [shape: f32[1,128], index: 5, kind: input, shape index: {}]
  %s6 = inlined_call_operand.<no memory space> [shape: f32[1], index: 6, kind: input, shape index: {}]
  %s7 = inlined_call_operand.vmem [shape: f32[8,1], index: 7, kind: output, shape index: {}]
  %s8 = sld [smem:[#allocation0]]
  $region50: #{tpu_custom_call.1} parent=0
    _
  %s10 = ssub.s32 1, %s8
  %s11 = scalar_select 0, %s10, %s8
  %12 = sst [smem:[#allocation2]] %s6
  $region1: #{tpu_custom_call.1} parent=0
    #allocation3 [shape = 'u8[4096]{0}', space=vmem, size = 0x1000, scoped, tag = 'input window, operand 0, single buffered']
    #allocation4 [shape = 's32[1]{0}', space=sflag, size = 0x4, scoped, tag = 'scoped memory for tpu_custom_call.1']
    #allocation5 [shape = 'u8[16384]{0}', space=vmem, size = 0x4000, scoped, tag = 'input window, operand 1, single buffered']
    #allocation6 [shape = 's32[1]{0}', space=sflag, size = 0x4, scoped, tag = 'scoped memory for tpu_custom_call.1']
    #allocation7 [shape = 'u8[65536]{0}', space=vmem, size = 0x10000, scoped, tag = 'input window, operand 3, single buffered']
    %13 = vsyncpa [#allocation4], 0
    %14 = vsyncpa [#allocation6], 0
    // Predicated region
    $region2: #{tpu_custom_call.1} parent=1 // pred_check
      _
    $region3: #{tpu_custom_call.1} parent=1 // pred_check_branch
      %16 = sbr.rel (0) target = $region5
    $region4: #{tpu_custom_call.1} parent=1 // pred_region
      %18 = vsyncadd [#allocation4], 0
      %s20 = sshll.u32 %s0, 4
      %s21 = int_to_ptr.hbm [resolvable:$true] %s20
      %s22 = sshll.u32 [#allocation3], 4
      %s23 = int_to_ptr.vmem [resolvable:$true] %s22
      %25 = dma.hbm_to_vmem [thread:$0]  %s21, 128, %s23, [#allocation4]
    $region5: #{tpu_custom_call.1} parent=1 // pred_fallthru
      _
    // Predicated region
    $region6: #{tpu_custom_call.1} parent=1 // pred_check
      _
    $region7: #{tpu_custom_call.1} parent=1 // pred_check_branch
      %27 = sbr.rel (0) target = $region9
    $region8: #{tpu_custom_call.1} parent=1 // pred_region
      %29 = vsyncadd [#allocation6], 0
      %s30 = sshll.u32 %s1, 4
      %s31 = int_to_ptr.hbm [resolvable:$true] %s30
      %s32 = sshll.u32 [#allocation5], 4
      %s33 = int_to_ptr.vmem [resolvable:$true] %s32
      %38 = dma.hbm_to_vmem [thread:$0]  %s31, 512, %s33, [#allocation6], 128, 128, 8
    $region9: #{tpu_custom_call.1} parent=1 // pred_fallthru
      _
    // Predicated region
    $region10: #{tpu_custom_call.1} parent=1 // pred_check
      _
    $region11: #{tpu_custom_call.1} parent=1 // pred_check_branch
      %40 = sbr.rel (0) target = $region13
    $region12: #{tpu_custom_call.1} parent=1 // pred_region
      _
    $region13: #{tpu_custom_call.1} parent=1 // pred_fallthru
      _
    // Predicated region
    $region14: #{tpu_custom_call.1} parent=1 // pred_check
      _
    $region15: #{tpu_custom_call.1} parent=1 // pred_check_branch
      %42 = sbr.rel (0) target = $region17
    $region16: #{tpu_custom_call.1} parent=1 // pred_region
      %44 = vsyncadd [#allocation6], 0
      %s45 = sshll.u32 %s3, 4
      %s46 = int_to_ptr.hbm [resolvable:$true] %s45
      %s47 = sshll.u32 [#allocation7], 4
      %s48 = int_to_ptr.vmem [resolvable:$true] %s47
      %53 = dma.hbm_to_vmem [thread:$0]  %s46, 2048, %s48, [#allocation6], 128, 128, 8
    $region17: #{tpu_custom_call.1} parent=1 // pred_fallthru
      _
    // Predicated region
    $region18: #{tpu_custom_call.1} parent=1 // pred_check
      _
    $region19: #{tpu_custom_call.1} parent=1 // pred_check_branch
      %55 = sbr.rel (0) target = $region21
    $region20: #{tpu_custom_call.1} parent=1 // pred_region
      _
    $region21: #{tpu_custom_call.1} parent=1 // pred_fallthru
      _
    // Predicated region
    $region22: #{tpu_custom_call.1} parent=1 // pred_check
      _
    $region23: #{tpu_custom_call.1} parent=1 // pred_check_branch
      %57 = sbr.rel (0) target = $region25
    $region24: #{tpu_custom_call.1} parent=1 // pred_region
      _
    $region25: #{tpu_custom_call.1} parent=1 // pred_fallthru
      _
    // Predicated region
    $region26: #{tpu_custom_call.1} parent=1 // pred_check
      _
    $region27: #{tpu_custom_call.1} parent=1 // pred_check_branch
      %59 = sbr.rel (0) target = $region29
    $region28: #{tpu_custom_call.1} parent=1 // pred_region
      _
    $region29: #{tpu_custom_call.1} parent=1 // pred_fallthru
      _
    // Predicated region
    $region30: #{tpu_custom_call.1} parent=1 // pred_check
      _
    $region31: #{tpu_custom_call.1} parent=1 // pred_check_branch
      %61 = sbr.rel (0) target = $region33
    $region32: #{tpu_custom_call.1} parent=1 // pred_region
      %63 = dma.done [#allocation4], 128
    $region33: #{tpu_custom_call.1} parent=1 // pred_fallthru
      _
    // Predicated region
    $region34: #{tpu_custom_call.1} parent=1 // pred_check
      _
    $region35: #{tpu_custom_call.1} parent=1 // pred_check_branch
      %65 = sbr.rel (0) target = $region37
    $region36: #{tpu_custom_call.1} parent=1 // pred_region
      %67 = dma.done [#allocation6], 512
    $region37: #{tpu_custom_call.1} parent=1 // pred_fallthru
      _
    // Predicated region
    $region38: #{tpu_custom_call.1} parent=1 // pred_check
      _
    $region39: #{tpu_custom_call.1} parent=1 // pred_check_branch
      %69 = sbr.rel (0) target = $region41
    $region40: #{tpu_custom_call.1} parent=1 // pred_region
      %71 = dma.done [#allocation6], 2048
    $region41: #{tpu_custom_call.1} parent=1 // pred_fallthru
      _
    %v72 = vld [vmem:[#allocation3] sm:$0xff]
    %v73 = vld [vmem:[#allocation5] sm:$0xff]
    %v74 = vld [vmem:[#allocation5 + $0x8] sm:$0xff]
    %v75 = vld [vmem:[#allocation5 + $0x10] sm:$0xff]
    %v76 = vld [vmem:[#allocation5 + $0x18] sm:$0xff]
    %v77 = vld [vmem:[%s2] sm:$0x1]
    %v79 = vperm.slane %v77, 0
    %vm81 = vcmask 261120
    %v83 = vsel %vm81, %v72, 0
    %85 = vmatpush.msra.mxu0 0.0
    %86 = vmatpush.msra.mxu0 0.0
    %87 = vmatpush.msra.mxu0 0.0
    %88 = vmatpush.msra.mxu0 0.0
    %89 = vmatpush.msra.mxu0 0.0
    %90 = vmatpush.msra.mxu0 0.0
    %91 = vmatpush.msra.mxu0 0.0
    %92 = vmatpush.msra.mxu0 0.0
    %93 = vmatpush.msra.mxu0 0.0
    %94 = vmatpush.msra.mxu0 0.0
    %95 = vmatpush.msra.mxu0 0.0
    %96 = vmatpush.msra.mxu0 0.0
    %97 = vmatpush.msra.mxu0 %v76
    %98 = vmatpush.msra.mxu0 %v75
    %99 = vmatpush.msra.mxu0 %v74
    %100 = vmatpush.msra.mxu0 %v73
    %101 = vmatmul.f32.gmra.mxu0 %v83
    %v102 = vpop.f32.mrf.mxu0
    %v103 = vadd.f32 %v79, %v102
    %104 = vdwg.mxu0
    %v105 = vmax.f32 %v103, 0.0
    %v106 = vld [vmem:[#allocation7] sm:$0xff]
    %v107 = vld [vmem:[#allocation7 + $0x8] sm:$0xff]
    %v108 = vld [vmem:[#allocation7 + $0x10] sm:$0xff]
    %v109 = vld [vmem:[#allocation7 + $0x18] sm:$0xff]
    %v110 = vld [vmem:[#allocation7 + $0x20] sm:$0xff]
    %v111 = vld [vmem:[#allocation7 + $0x28] sm:$0xff]
    %v112 = vld [vmem:[#allocation7 + $0x30] sm:$0xff]
    %v113 = vld [vmem:[#allocation7 + $0x38] sm:$0xff]
    %v114 = vld [vmem:[#allocation7 + $0x40] sm:$0xff]
    %v115 = vld [vmem:[#allocation7 + $0x48] sm:$0xff]
    %v116 = vld [vmem:[#allocation7 + $0x50] sm:$0xff]
    %v117 = vld [vmem:[#allocation7 + $0x58] sm:$0xff]
    %v118 = vld [vmem:[#allocation7 + $0x60] sm:$0xff]
    %v119 = vld [vmem:[#allocation7 + $0x68] sm:$0xff]
    %v120 = vld [vmem:[#allocation7 + $0x70] sm:$0xff]
    %v121 = vld [vmem:[#allocation7 + $0x78] sm:$0xff]
    %v122 = vld [vmem:[%s4] sm:$0x1]
    %v124 = vperm.slane %v122, 0
    %126 = vmatpush.msra.mxu0 %v121
    %127 = vmatpush.msra.mxu0 %v120
    %128 = vmatpush.msra.mxu0 %v119
    %129 = vmatpush.msra.mxu0 %v118
    %130 = vmatpush.msra.mxu0 %v117
    %131 = vmatpush.msra.mxu0 %v116
    %132 = vmatpush.msra.mxu0 %v115
    %133 = vmatpush.msra.mxu0 %v114
    %134 = vmatpush.msra.mxu0 %v113
    %135 = vmatpush.msra.mxu0 %v112
    %136 = vmatpush.msra.mxu0 %v111
    %137 = vmatpush.msra.mxu0 %v110
    %138 = vmatpush.msra.mxu0 %v109
    %139 = vmatpush.msra.mxu0 %v108
    %140 = vmatpush.msra.mxu0 %v107
    %141 = vmatpush.msra.mxu0 %v106
    %142 = vmatmul.f32.gmra.mxu0 %v105
    %v143 = vpop.f32.mrf.mxu0
    %v144 = vadd.f32 %v124, %v143
    %145 = vdwg.mxu0
    %v146 = vmax.f32 %v144, 0.0
    %v147 = vld [vmem:[%s5] sm:$0x1]
    %v149 = vperm.slane %v147, 0
    %v151 = vmul.f32 %v146, %v149
    %152 = vadd.xlane.f32.xlu0 %v151
    %v153 = vpop.xlane.xlu0 %152
    %s154 = sld [smem:[#allocation2]]
    %v155 = vstv %s154
    %v156 = vadd.f32 %v153, %v155
    %vm157 = vcmask 7168
    %158 = vst.msk [vmem:[%s7] sm:$0xff] %vm157, %v156
    // Predicated region
    $region42: #{tpu_custom_call.1} parent=1 // pred_check
      _
    $region43: #{tpu_custom_call.1} parent=1 // pred_check_branch
      %160 = sbr.rel (0) target = $region45
    $region44: #{tpu_custom_call.1} parent=1 // pred_region
      _
    $region45: #{tpu_custom_call.1} parent=1 // pred_fallthru
      _
    // Predicated region
    $region46: #{tpu_custom_call.1} parent=1 // pred_check
      _
    $region47: #{tpu_custom_call.1} parent=1 // pred_check_branch
      %162 = sbr.rel (0) target = $region49
    $region48: #{tpu_custom_call.1} parent=1 // pred_region
      _
    $region49: #{tpu_custom_call.1} parent=1 // pred_fallthru
      _
    %163 = vsyncpa [#allocation4], 1
    %164 = vsyncpa [#allocation6], 1

</llo_original>
